<compile_context>
chip_gen: v7x
topology: tpu7x:2x2x1
jax: 0.10.0
libtpu: 0.0.40
codegen_flags: <defaults>
</compile_context>

<pallas_src>
import math

import jax
import jax.numpy as jnp
from jax.experimental import pallas as pl
from jax.experimental.pallas import tpu as pltpu


def _round_up(x: int, m: int) -> int:
    return (x + m - 1) // m * m


# ---------------------------------------------------------------------------
# Kernels
# ---------------------------------------------------------------------------
def _concept_kernel_full(x_ref, w1_ref, b1_ref, w2_ref, b2_ref, s_ref,
                         logits_ref, wemb_ref):
    """One batch tile: feature transform -> concept logits -> weighted embeddings."""
    x = x_ref[...]

    # feature_transform: Linear(F -> E) + ReLU  (Dropout = identity in eval mode)
    h = jnp.dot(x, w1_ref[...], preferred_element_type=jnp.float32)
    h = h + b1_ref[...].astype(jnp.float32)
    h = jnp.maximum(h, 0.0)

    # concept logits: Linear(E -> C)
    logits = jnp.dot(h.astype(w2_ref.dtype), w2_ref[...],
                     preferred_element_type=jnp.float32)
    logits = logits + b2_ref[...].astype(jnp.float32)

    # sigmoid -> concept probabilities (EUP exp path, all f32)
    probs = 1.0 / (1.0 + jnp.exp(-logits))

    # weighted embeddings, lane-dense [tm, C*E]:
    #   wemb[b, c*E + e] = probs[b, c] * emb[c, e]  ==  probs @ S  (single MXU matmul)
    wemb = jnp.dot(probs.astype(s_ref.dtype), s_ref[...],
                   preferred_element_type=jnp.float32)

    logits_ref[...] = logits.astype(logits_ref.dtype)
    wemb_ref[...] = wemb.astype(wemb_ref.dtype)


def _concept_kernel_logits_only(x_ref, w1_ref, b1_ref, w2_ref, b2_ref, logits_ref):
    x = x_ref[...]
    h = jnp.dot(x, w1_ref[...], preferred_element_type=jnp.float32)
    h = jnp.maximum(h + b1_ref[...].astype(jnp.float32), 0.0)
    logits = jnp.dot(h.astype(w2_ref.dtype), w2_ref[...],
                     preferred_element_type=jnp.float32)
    logits = logits + b2_ref[...].astype(jnp.float32)
    logits_ref[...] = logits.astype(logits_ref.dtype)


# ---------------------------------------------------------------------------
# Wrapper
# ---------------------------------------------------------------------------
def concept_embedding_forward(features, w1, b1, concept_kernels, concept_biases,
                              emb_weight, *, return_embedding=True, block_b=None):
    """Pallas TPU forward of ConceptEmbedding.

    Args:
      features:        [B, F]
      w1:              [E, F]   (PyTorch Linear weight layout)
      b1:              [E]
      concept_kernels: [C, E]
      concept_biases:  [C]
      emb_weight:      [C, E]   (nn.Embedding weight)
    Returns:
      logits [B, C]  (and weighted_embeddings [B, C, E] if return_embedding)
    """
    B, Fdim = features.shape
    E, F_in = w1.shape
    C, E2 = concept_kernels.shape
    assert F_in == Fdim and E2 == E and emb_weight.shape == (C, E)

    out_dtype = features.dtype

    # Pre-transpose PyTorch [out, in] weights -> [in, out] outside the kernel.
    w1_t = jnp.asarray(w1).T                   # [F, E]
    w2_t = jnp.asarray(concept_kernels).T      # [E, C]
    b1_r = jnp.asarray(b1).reshape(1, E)
    b2_r = jnp.asarray(concept_biases).reshape(1, C)

    # Batch tiling: only the batch axis is pipelined; pad B to a tile multiple.
    if block_b is None:
        block_b = min(256, _round_up(B, 8))
    padded_B = _round_up(B, block_b)
    x = features
    if padded_B != B:
        x = jnp.pad(x, ((0, padded_B - B), (0, 0)))
    grid = (padded_B // block_b,)

    cparams = pltpu.CompilerParams(dimension_semantics=("parallel",))

    base_in_specs = [
        pl.BlockSpec((block_b, Fdim), lambda i: (i, 0)),   # features (pipelined)
        pl.BlockSpec((Fdim, E), lambda i: (0, 0)),         # W1^T   (VMEM-resident)
        pl.BlockSpec((1, E), lambda i: (0, 0)),            # b1
        pl.BlockSpec((E, C), lambda i: (0, 0)),            # kernels^T
        pl.BlockSpec((1, C), lambda i: (0, 0)),            # concept biases
    ]

    if not return_embedding:
        logits = pl.pallas_call(
            _concept_kernel_logits_only,
            out_shape=jax.ShapeDtypeStruct((padded_B, C), out_dtype),
            grid=grid,
            in_specs=base_in_specs,
            out_specs=pl.BlockSpec((block_b, C), lambda i: (i, 0)),
            compiler_params=cparams,
        )(x, w1_t, b1_r, w2_t, b2_r)
        return logits[:B]

    # Scatter matrix S[c, c*E + e] = emb[c, e]  (built once, outside the kernel).
    emb = jnp.asarray(emb_weight)
    S = (jnp.eye(C, dtype=emb.dtype)[:, :, None] * emb[:, None, :]).reshape(C, C * E)

    logits, wemb_flat = pl.pallas_call(
        _concept_kernel_full,
        out_shape=(
            jax.ShapeDtypeStruct((padded_B, C), out_dtype),
            jax.ShapeDtypeStruct((padded_B, C * E), out_dtype),  # lane-dense slab
        ),
        grid=grid,
        in_specs=base_in_specs + [pl.BlockSpec((C, C * E), lambda i: (0, 0))],
        out_specs=(
            pl.BlockSpec((block_b, C), lambda i: (i, 0)),
            pl.BlockSpec((block_b, C * E), lambda i: (i, 0)),
        ),
        compiler_params=cparams,
    )(x, w1_t, b1_r, w2_t, b2_r, S)

    logits = logits[:B]
    weighted_embeddings = wemb_flat[:B].reshape(B, C, E)
    return logits, weighted_embeddings


# ---------------------------------------------------------------------------
# Demo / self-test
# ---------------------------------------------------------------------------
if __name__ == "__main__":
    B, Fdim, E, C = 16, 128, 64, 32  # batch, text_feature_dim, embedding_dim, nr_concepts

    key = jax.random.PRNGKey(0)
    k1, k2, k3, k4, k5, k6 = jax.random.split(key, 6)

    features = jax.random.normal(k1, (B, Fdim), dtype=jnp.float32)
    # PyTorch-style parameter layouts.
    w1 = jax.random.normal(k2, (E, Fdim), dtype=jnp.float32) * (1.0 / math.sqrt(Fdim))
    b1 = jax.random.normal(k3, (E,), dtype=jnp.float32) * 0.01
    concept_kernels = jax.random.normal(k4, (C, E), dtype=jnp.float32) * (1.0 / math.sqrt(E))
    concept_biases = jax.random.normal(k5, (C,), dtype=jnp.float32) * 0.01
    emb_weight = jax.random.normal(k6, (C, E), dtype=jnp.float32)

    logits, wemb = concept_embedding_forward(
        features, w1, b1, concept_kernels, concept_biases, emb_weight,
        return_embedding=True)
    (logits, wemb) = jax.block_until_ready((logits, wemb))

    # Pure-JAX reference (eval-mode: dropout = identity).
    h_ref = jnp.maximum(features @ w1.T + b1, 0.0)
    logits_ref = h_ref @ concept_kernels.T + concept_biases
    probs_ref = jax.nn.sigmoid(logits_ref)
    wemb_ref = probs_ref[:, :, None] * emb_weight[None, :, :]

    assert logits.shape == (B, C) and wemb.shape == (B, C, E)
    assert jnp.allclose(logits, logits_ref, atol=2e-3, rtol=2e-3)
    assert jnp.allclose(wemb, wemb_ref, atol=2e-3, rtol=2e-3)

    print("KERNEL_OK")
</pallas_src>

<mosaic_0001>
module attributes {stable_mosaic.version = 11 : i64} {
  func.func @_concept_kernel_full(%arg0: i32, %arg1: memref<16x128xf32, #tpu.memory_space<vmem>>, %arg2: memref<128x64xf32, #tpu.memory_space<vmem>>, %arg3: memref<1x64xf32, #tpu.memory_space<vmem>>, %arg4: memref<64x32xf32, #tpu.memory_space<vmem>>, %arg5: memref<1x32xf32, #tpu.memory_space<vmem>>, %arg6: memref<32x2048xf32, #tpu.memory_space<vmem>>, %arg7: memref<16x32xf32, #tpu.memory_space<vmem>>, %arg8: memref<16x2048xf32, #tpu.memory_space<vmem>>) attributes {dimension_semantics = [#tpu.dimension_semantics<parallel>], iteration_bounds = array<i64: 1>, scalar_prefetch = 0 : i64, scratch_operands = 0 : i64, tpu.core_type = #tpu.core_type<tc>, window_params = [{transform_indices = @transform_0, window_bounds = array<i64: 16, 128>}, {pipeline_mode = #tpu.pipeline_mode<synchronous>, transform_indices = @transform_1, window_bounds = array<i64: 128, 64>}, {pipeline_mode = #tpu.pipeline_mode<synchronous>, transform_indices = @transform_2, window_bounds = array<i64: 1, 64>}, {pipeline_mode = #tpu.pipeline_mode<synchronous>, transform_indices = @transform_3, window_bounds = array<i64: 64, 32>}, {pipeline_mode = #tpu.pipeline_mode<synchronous>, transform_indices = @transform_4, window_bounds = array<i64: 1, 32>}, {pipeline_mode = #tpu.pipeline_mode<synchronous>, transform_indices = @transform_5, window_bounds = array<i64: 32, 2048>}, {transform_indices = @transform_6, window_bounds = array<i64: 16, 32>}, {transform_indices = @transform_7, window_bounds = array<i64: 16, 2048>}]} {
    %c0 = arith.constant 0 : index
    %c0_0 = arith.constant 0 : index
    %0 = vector.load %arg1[%c0, %c0_0] : memref<16x128xf32, #tpu.memory_space<vmem>>, vector<16x128xf32>
    %c0_1 = arith.constant 0 : index
    %c0_2 = arith.constant 0 : index
    %1 = vector.load %arg2[%c0_1, %c0_2] : memref<128x64xf32, #tpu.memory_space<vmem>>, vector<128x64xf32>
    %cst = arith.constant dense<0.000000e+00> : vector<16x64xf32>
    %2 = tpu.matmul %0, %1, %cst {dimension_numbers = #tpu.dot_dimension_numbers<[1], [0], [0], [1], [0, 0, 1, 1], [], []>} : vector<16x128xf32>, vector<128x64xf32>, vector<16x64xf32> -> vector<16x64xf32>
    %c0_3 = arith.constant 0 : index
    %c0_4 = arith.constant 0 : index
    %3 = vector.load %arg3[%c0_3, %c0_4] : memref<1x64xf32, #tpu.memory_space<vmem>>, vector<1x64xf32>
    %4 = vector.broadcast %3 : vector<1x64xf32> to vector<16x64xf32>
    %5 = arith.addf %2, %4 : vector<16x64xf32>
    %cst_5 = arith.constant 0.000000e+00 : f32
    %6 = vector.broadcast %cst_5 : f32 to vector<16x64xf32>
    %7 = arith.maximumf %5, %6 : vector<16x64xf32>
    %c0_6 = arith.constant 0 : index
    %c0_7 = arith.constant 0 : index
    %8 = vector.load %arg4[%c0_6, %c0_7] : memref<64x32xf32, #tpu.memory_space<vmem>>, vector<64x32xf32>
    %cst_8 = arith.constant dense<0.000000e+00> : vector<16x32xf32>
    %9 = tpu.matmul %7, %8, %cst_8 {dimension_numbers = #tpu.dot_dimension_numbers<[1], [0], [0], [1], [0, 0, 1, 1], [], []>} : vector<16x64xf32>, vector<64x32xf32>, vector<16x32xf32> -> vector<16x32xf32>
    %c0_9 = arith.constant 0 : index
    %c0_10 = arith.constant 0 : index
    %10 = vector.load %arg5[%c0_9, %c0_10] : memref<1x32xf32, #tpu.memory_space<vmem>>, vector<1x32xf32>
    %11 = vector.broadcast %10 : vector<1x32xf32> to vector<16x32xf32>
    %12 = arith.addf %9, %11 : vector<16x32xf32>
    %cst_11 = arith.constant 0.000000e+00 : f32
    %13 = vector.broadcast %cst_11 : f32 to vector<16x32xf32>
    %14 = arith.subf %13, %12 : vector<16x32xf32>
    %15 = math.exp %14 : vector<16x32xf32>
    %cst_12 = arith.constant 1.000000e+00 : f32
    %16 = vector.broadcast %cst_12 : f32 to vector<16x32xf32>
    %17 = arith.addf %16, %15 : vector<16x32xf32>
    %cst_13 = arith.constant 1.000000e+00 : f32
    %18 = vector.broadcast %cst_13 : f32 to vector<16x32xf32>
    %19 = arith.divf %18, %17 : vector<16x32xf32>
    %c0_14 = arith.constant 0 : index
    %c0_15 = arith.constant 0 : index
    %20 = vector.load %arg6[%c0_14, %c0_15] : memref<32x2048xf32, #tpu.memory_space<vmem>>, vector<32x2048xf32>
    %cst_16 = arith.constant dense<0.000000e+00> : vector<16x2048xf32>
    %21 = tpu.matmul %19, %20, %cst_16 {dimension_numbers = #tpu.dot_dimension_numbers<[1], [0], [0], [1], [0, 0, 1, 1], [], []>} : vector<16x32xf32>, vector<32x2048xf32>, vector<16x2048xf32> -> vector<16x2048xf32>
    %c0_17 = arith.constant 0 : index
    %c0_18 = arith.constant 0 : index
    %22 = vector.load %arg7[%c0_17, %c0_18] : memref<16x32xf32, #tpu.memory_space<vmem>>, vector<16x32xf32>
    tpu.vector_store %arg7[%c0_17, %c0_18], %12 {strides = array<i32>} : memref<16x32xf32, #tpu.memory_space<vmem>>, vector<16x32xf32>,
    %c0_19 = arith.constant 0 : index
    %c0_20 = arith.constant 0 : index
    %23 = vector.load %arg8[%c0_19, %c0_20] : memref<16x2048xf32, #tpu.memory_space<vmem>>, vector<16x2048xf32>
    tpu.vector_store %arg8[%c0_19, %c0_20], %21 {strides = array<i32>} : memref<16x2048xf32, #tpu.memory_space<vmem>>, vector<16x2048xf32>,
    return
  }
  func.func @transform_0(%arg0: i32) -> (i32, i32) {
    %c0_i32 = arith.constant 0 : i32
    %c0_i32_0 = arith.constant 0 : i32
    return %arg0, %c0_i32 : i32, i32
  }
  func.func @transform_1(%arg0: i32) -> (i32, i32) {
    %c0_i32 = arith.constant 0 : i32
    %c0_i32_0 = arith.constant 0 : i32
    %c0_i32_1 = arith.constant 0 : i32
    return %c0_i32, %c0_i32_0 : i32, i32
  }
  func.func @transform_2(%arg0: i32) -> (i32, i32) {
    %c0_i32 = arith.constant 0 : i32
    %c0_i32_0 = arith.constant 0 : i32
    %c0_i32_1 = arith.constant 0 : i32
    return %c0_i32, %c0_i32_0 : i32, i32
  }
  func.func @transform_3(%arg0: i32) -> (i32, i32) {
    %c0_i32 = arith.constant 0 : i32
    %c0_i32_0 = arith.constant 0 : i32
    %c0_i32_1 = arith.constant 0 : i32
    return %c0_i32, %c0_i32_0 : i32, i32
  }
  func.func @transform_4(%arg0: i32) -> (i32, i32) {
    %c0_i32 = arith.constant 0 : i32
    %c0_i32_0 = arith.constant 0 : i32
    %c0_i32_1 = arith.constant 0 : i32
    return %c0_i32, %c0_i32_0 : i32, i32
  }
  func.func @transform_5(%arg0: i32) -> (i32, i32) {
    %c0_i32 = arith.constant 0 : i32
    %c0_i32_0 = arith.constant 0 : i32
    %c0_i32_1 = arith.constant 0 : i32
    return %c0_i32, %c0_i32_0 : i32, i32
  }
  func.func @transform_6(%arg0: i32) -> (i32, i32) {
    %c0_i32 = arith.constant 0 : i32
    %c0_i32_0 = arith.constant 0 : i32
    return %arg0, %c0_i32 : i32, i32
  }
  func.func @transform_7(%arg0: i32) -> (i32, i32) {
    %c0_i32 = arith.constant 0 : i32
    %c0_i32_0 = arith.constant 0 : i32
    return %arg0, %c0_i32 : i32, i32
  }
}

</mosaic_0001>

<llo_original>
// kernel: tpu_custom_call.1
$region0: #{tpu_custom_call.1}
  #allocation0 [shape = 'u32[]', space=smem, size = 0x4, offset = 0x4, fixed_abs, tag = 'smem constant byte address 0x4 - core index']
  #allocation1 [shape = 'u32[144,128]{1,0:T(1,128)}', space=vmem, size = 0x12000, scoped, tag = 'internal scratch']
  %s0 = inlined_call_operand.vmem [shape: f32[16,128], index: 0, kind: input, shape index: {}]
  %s1 = inlined_call_operand.vmem [shape: f32[128,64], index: 1, kind: input, shape index: {}]
  %s2 = inlined_call_operand.vmem [shape: f32[1,64], index: 2, kind: input, shape index: {}]
  %s3 = inlined_call_operand.vmem [shape: f32[64,32], index: 3, kind: input, shape index: {}]
  %s4 = inlined_call_operand.vmem [shape: f32[1,32], index: 4, kind: input, shape index: {}]
  %s5 = inlined_call_operand.hbm [shape: f32[32,2048], index: 5, kind: input, shape index: {}]
  %s6 = inlined_call_operand.hbm [shape: f32[16,32], index: 6, kind: output, shape index: {0}]
  %s7 = inlined_call_operand.hbm [shape: f32[16,2048], index: 7, kind: output, shape index: {1}]
  %8 = xla_tuple %s6, %s7
  %s9 = sld [smem:[#allocation0]]
  $region46: #{tpu_custom_call.1} parent=0
    _
  %s11 = ssub.s32 1, %s9
  %s12 = scalar_select 0, %s11, %s9
  $region1: #{tpu_custom_call.1} parent=0
    #allocation2 [shape = 'u8[262144]{0}', space=vmem, size = 0x40000, scoped, tag = 'input window, operand 5, single buffered']
    #allocation3 [shape = 's32[1]{0}', space=sflag, size = 0x4, scoped, tag = 'scoped memory for tpu_custom_call.1']
    #allocation4 [shape = 's32[1]{0}', space=sflag, size = 0x4, scoped, tag = 'scoped memory for tpu_custom_call.1']
    #allocation5 [shape = 'u8[8192]{0}', space=vmem, size = 0x2000, scoped, tag = 'output window, operand 0, single buffered']
    #allocation6 [shape = 'u8[131072]{0}', space=vmem, size = 0x20000, scoped, tag = 'output window, operand 1, single buffered']
    #allocation7 [shape = 's32[1]{0}', space=sflag, size = 0x4, scoped, tag = 'scoped memory for tpu_custom_call.1']
    %13 = vsyncpa [#allocation3], 0
    %14 = vsyncpa [#allocation4], 0
    %15 = vsyncpa [#allocation7], 0
    // Predicated region
    $region2: #{tpu_custom_call.1} parent=1 // pred_check
      _
    $region3: #{tpu_custom_call.1} parent=1 // pred_check_branch
      %17 = sbr.rel (0) target = $region5
    $region4: #{tpu_custom_call.1} parent=1 // pred_region
      _
    $region5: #{tpu_custom_call.1} parent=1 // pred_fallthru
      _
    // Predicated region
    $region6: #{tpu_custom_call.1} parent=1 // pred_check
      _
    $region7: #{tpu_custom_call.1} parent=1 // pred_check_branch
      %19 = sbr.rel (0) target = $region9
    $region8: #{tpu_custom_call.1} parent=1 // pred_region
      _
    $region9: #{tpu_custom_call.1} parent=1 // pred_fallthru
      _
    // Predicated region
    $region10: #{tpu_custom_call.1} parent=1 // pred_check
      _
    $region11: #{tpu_custom_call.1} parent=1 // pred_check_branch
      %21 = sbr.rel (0) target = $region13
    $region12: #{tpu_custom_call.1} parent=1 // pred_region
      _
    $region13: #{tpu_custom_call.1} parent=1 // pred_fallthru
      _
    // Predicated region
    $region14: #{tpu_custom_call.1} parent=1 // pred_check
      _
    $region15: #{tpu_custom_call.1} parent=1 // pred_check_branch
      %23 = sbr.rel (0) target = $region17
    $region16: #{tpu_custom_call.1} parent=1 // pred_region
      _
    $region17: #{tpu_custom_call.1} parent=1 // pred_fallthru
      _
    // Predicated region
    $region18: #{tpu_custom_call.1} parent=1 // pred_check
      _
    $region19: #{tpu_custom_call.1} parent=1 // pred_check_branch
      %25 = sbr.rel (0) target = $region21
    $region20: #{tpu_custom_call.1} parent=1 // pred_region
      _
    $region21: #{tpu_custom_call.1} parent=1 // pred_fallthru
      _
    // Predicated region
    $region22: #{tpu_custom_call.1} parent=1 // pred_check
      _
    $region23: #{tpu_custom_call.1} parent=1 // pred_check_branch
      %27 = sbr.rel (0) target = $region25
    $region24: #{tpu_custom_call.1} parent=1 // pred_region
      %s29 = ssub.s32 8192, 8192
      %30 = vsyncadd [#allocation3], %s29
      %s31 = sshll.u32 [#allocation2], 4
      %s32 = int_to_ptr.vmem [resolvable:$true] %s31
      %37 = dma.hbm_to_vmem [thread:$0]  %s5, 8192, %s32, [#allocation3], 2048, 2048, 128
    $region25: #{tpu_custom_call.1} parent=1 // pred_fallthru
      _
    // Predicated region
    $region26: #{tpu_custom_call.1} parent=1 // pred_check
      _
    $region27: #{tpu_custom_call.1} parent=1 // pred_check_branch
      %39 = sbr.rel (0) target = $region29
    $region28: #{tpu_custom_call.1} parent=1 // pred_region
      %40 = dma.done [#allocation3], 8192
    $region29: #{tpu_custom_call.1} parent=1 // pred_fallthru
      _
    %v41 = vld [vmem:[%s0] sm:$0xff]
    %v42 = vld [vmem:[%s0 + $0x8] sm:$0xff]
    %v43 = vld [vmem:[%s1] sm:$0xff]
    %v44 = vld [vmem:[%s1 + $0x8] sm:$0xff]
    %v45 = vld [vmem:[%s1 + $0x10] sm:$0xff]
    %v46 = vld [vmem:[%s1 + $0x18] sm:$0xff]
    %v47 = vld [vmem:[%s1 + $0x20] sm:$0xff]
    %v48 = vld [vmem:[%s1 + $0x28] sm:$0xff]
    %v49 = vld [vmem:[%s1 + $0x30] sm:$0xff]
    %v50 = vld [vmem:[%s1 + $0x38] sm:$0xff]
    %v51 = vld [vmem:[%s1 + $0x40] sm:$0xff]
    %v52 = vld [vmem:[%s1 + $0x48] sm:$0xff]
    %v53 = vld [vmem:[%s1 + $0x50] sm:$0xff]
    %v54 = vld [vmem:[%s1 + $0x58] sm:$0xff]
    %v55 = vld [vmem:[%s1 + $0x60] sm:$0xff]
    %v56 = vld [vmem:[%s1 + $0x68] sm:$0xff]
    %v57 = vld [vmem:[%s1 + $0x70] sm:$0xff]
    %v58 = vld [vmem:[%s1 + $0x78] sm:$0xff]
    %v59 = vld [vmem:[%s2] sm:$0x1]
    %v61 = vlaneseq
    %v62 = vshrl.u32 %v61, 7
    %v63 = vsub.s32 0, %v62
    %v64 = vrot.slane %v59, %v63
    %66 = vmatprep.subr.mxu0 0.0
    %67 = vmatpush1.msra.mxu0 %v43
    %68 = vmatprep.subr.mxu0 0.0
    %69 = vmatpush1.msra.mxu0 %v44
    %70 = vmatprep.subr.mxu0 0.0
    %71 = vmatpush1.msra.mxu0 %v45
    %72 = vmatprep.subr.mxu0 0.0
    %73 = vmatpush1.msra.mxu0 %v46
    %74 = vmatprep.subr.mxu0 0.0
    %75 = vmatpush1.msra.mxu0 %v47
    %76 = vmatprep.subr.mxu0 0.0
    %77 = vmatpush1.msra.mxu0 %v48
    %78 = vmatprep.subr.mxu0 0.0
    %79 = vmatpush1.msra.mxu0 %v49
    %80 = vmatprep.subr.mxu0 0.0
    %81 = vmatpush1.msra.mxu0 %v50
    %82 = vmatprep.subr.mxu0 0.0
    %83 = vmatpush1.msra.mxu0 %v51
    %84 = vmatprep.subr.mxu0 0.0
    %85 = vmatpush1.msra.mxu0 %v52
    %86 = vmatprep.subr.mxu0 0.0
    %87 = vmatpush1.msra.mxu0 %v53
    %88 = vmatprep.subr.mxu0 0.0
    %89 = vmatpush1.msra.mxu0 %v54
    %90 = vmatprep.subr.mxu0 0.0
    %91 = vmatpush1.msra.mxu0 %v55
    %92 = vmatprep.subr.mxu0 0.0
    %93 = vmatpush1.msra.mxu0 %v56
    %94 = vmatprep.subr.mxu0 0.0
    %95 = vmatpush1.msra.mxu0 %v57
    %96 = vmatprep.subr.mxu0 0.0
    %97 = vmatpush1.msra.mxu0 %v58
    %98 = vmatprep.subr.mxu0 0.0
    %99 = vmatpush1.msra.mxu0 0.0
    %100 = vmatprep.subr.mxu0 0.0
    %101 = vmatpush1.msra.mxu0 0.0
    %102 = vmatprep.subr.mxu0 0.0
    %103 = vmatpush1.msra.mxu0 0.0
    %104 = vmatprep.subr.mxu0 0.0
    %105 = vmatpush1.msra.mxu0 0.0
    %106 = vmatprep.subr.mxu0 0.0
    %107 = vmatpush1.msra.mxu0 0.0
    %108 = vmatprep.subr.mxu0 0.0
    %109 = vmatpush1.msra.mxu0 0.0
    %110 = vmatprep.subr.mxu0 0.0
    %111 = vmatpush1.msra.mxu0 0.0
    %112 = vmatprep.subr.mxu0 0.0
    %113 = vmatpush1.msra.mxu0 0.0
    %114 = vmatprep.subr.mxu0 0.0
    %115 = vmatpush1.msra.mxu0 0.0
    %116 = vmatprep.subr.mxu0 0.0
    %117 = vmatpush1.msra.mxu0 0.0
    %118 = vmatprep.subr.mxu0 0.0
    %119 = vmatpush1.msra.mxu0 0.0
    %120 = vmatprep.subr.mxu0 0.0
    %121 = vmatpush1.msra.mxu0 0.0
    %122 = vmatprep.subr.mxu0 0.0
    %123 = vmatpush1.msra.mxu0 0.0
    %124 = vmatprep.subr.mxu0 0.0
    %125 = vmatpush1.msra.mxu0 0.0
    %126 = vmatprep.subr.mxu0 0.0
    %127 = vmatpush1.msra.mxu0 0.0
    %128 = vmatprep.subr.mxu0 0.0
    %129 = vmatpush1.msra.mxu0 0.0
    %130 = vmatprep.mubr.f32.mxu0 0.0
    %131 = vmatmul.mubr.f32.gmra.mrb[0].mxu0 %v41
    %v132 = vpop.f32.mrb[0].mxu0
    %v133 = vadd.f32 %v64, %v132
    %v134 = vpop.f32.mrb[0].mxu0
    %135 = vmatprep.mubr.f32.mxu0 0.0
    %136 = vmatmul.mubr.f32.gmra.mrb[0].mxu0 %v42
    %v137 = vpop.f32.mrb[0].mxu0
    %v138 = vadd.f32 %v64, %v137
    %v139 = vpop.f32.mrb[0].mxu0
    %140 = vdwg.mxu0
    %v141 = vmax.f32 %v133, 0.0
    %v142 = vmax.f32 %v138, 0.0
    %v143 = vld [vmem:[%s3] sm:$0xff]
    %v144 = vld [vmem:[%s3 + $0x8] sm:$0xff]
    %v145 = vld [vmem:[%s3 + $0x10] sm:$0xff]
    %v146 = vld [vmem:[%s3 + $0x18] sm:$0xff]
    %v147 = vld [vmem:[%s3 + $0x20] sm:$0xff]
    %v148 = vld [vmem:[%s3 + $0x28] sm:$0xff]
    %v149 = vld [vmem:[%s3 + $0x30] sm:$0xff]
    %v150 = vld [vmem:[%s3 + $0x38] sm:$0xff]
    %v151 = vld [vmem:[%s4] sm:$0x1]
    %v153 = vlaneseq
    %v154 = vshrl.u32 %v153, 7
    %v155 = vsub.s32 0, %v154
    %v156 = vrot.slane %v151, %v155
    %vm158 = vcmask 523264
    %v160 = vsel %vm158, %v141, 0
    %v163 = vsel %vm158, %v142, 0
    %165 = vmatprep.subr.mxu0 0.0
    %166 = vmatpush1.msra.mxu0 %v143
    %167 = vmatprep.subr.mxu0 0.0
    %168 = vmatpush1.msra.mxu0 %v144
    %169 = vmatprep.subr.mxu0 0.0
    %170 = vmatpush1.msra.mxu0 %v145
    %171 = vmatprep.subr.mxu0 0.0
    %172 = vmatpush1.msra.mxu0 %v146
    %173 = vmatprep.subr.mxu0 0.0
    %174 = vmatpush1.msra.mxu0 %v147
    %175 = vmatprep.subr.mxu0 0.0
    %176 = vmatpush1.msra.mxu0 %v148
    %177 = vmatprep.subr.mxu0 0.0
    %178 = vmatpush1.msra.mxu0 %v149
    %179 = vmatprep.subr.mxu0 0.0
    %180 = vmatpush1.msra.mxu0 %v150
    %181 = vmatprep.subr.mxu0 0.0
    %182 = vmatpush1.msra.mxu0 0.0
    %183 = vmatprep.subr.mxu0 0.0
    %184 = vmatpush1.msra.mxu0 0.0
    %185 = vmatprep.subr.mxu0 0.0
    %186 = vmatpush1.msra.mxu0 0.0
    %187 = vmatprep.subr.mxu0 0.0
    %188 = vmatpush1.msra.mxu0 0.0
    %189 = vmatprep.subr.mxu0 0.0
    %190 = vmatpush1.msra.mxu0 0.0
    %191 = vmatprep.subr.mxu0 0.0
    %192 = vmatpush1.msra.mxu0 0.0
    %193 = vmatprep.subr.mxu0 0.0
    %194 = vmatpush1.msra.mxu0 0.0
    %195 = vmatprep.subr.mxu0 0.0
    %196 = vmatpush1.msra.mxu0 0.0
    %197 = vmatprep.subr.mxu0 0.0
    %198 = vmatpush1.msra.mxu0 0.0
    %199 = vmatprep.subr.mxu0 0.0
    %200 = vmatpush1.msra.mxu0 0.0
    %201 = vmatprep.subr.mxu0 0.0
    %202 = vmatpush1.msra.mxu0 0.0
    %203 = vmatprep.subr.mxu0 0.0
    %204 = vmatpush1.msra.mxu0 0.0
    %205 = vmatprep.subr.mxu0 0.0
    %206 = vmatpush1.msra.mxu0 0.0
    %207 = vmatprep.subr.mxu0 0.0
    %208 = vmatpush1.msra.mxu0 0.0
    %209 = vmatprep.subr.mxu0 0.0
    %210 = vmatpush1.msra.mxu0 0.0
    %211 = vmatprep.subr.mxu0 0.0
    %212 = vmatpush1.msra.mxu0 0.0
    %213 = vmatprep.subr.mxu0 0.0
    %214 = vmatpush1.msra.mxu0 0.0
    %215 = vmatprep.subr.mxu0 0.0
    %216 = vmatpush1.msra.mxu0 0.0
    %217 = vmatprep.subr.mxu0 0.0
    %218 = vmatpush1.msra.mxu0 0.0
    %219 = vmatprep.subr.mxu0 0.0
    %220 = vmatpush1.msra.mxu0 0.0
    %221 = vmatprep.subr.mxu0 0.0
    %222 = vmatpush1.msra.mxu0 0.0
    %223 = vmatprep.subr.mxu0 0.0
    %224 = vmatpush1.msra.mxu0 0.0
    %225 = vmatprep.subr.mxu0 0.0
    %226 = vmatpush1.msra.mxu0 0.0
    %227 = vmatprep.subr.mxu0 0.0
    %228 = vmatpush1.msra.mxu0 0.0
    %229 = vmatprep.mubr.f32.mxu0 0.0
    %230 = vmatmul.mubr.f32.gmra.mrb[0].mxu0 %v160
    %v231 = vpop.f32.mrb[0].mxu0
    %v232 = vadd.f32 %v156, %v231
    %v233 = vpop.f32.mrb[0].mxu0
    %234 = vmatprep.mubr.f32.mxu0 0.0
    %235 = vmatmul.mubr.f32.gmra.mrb[0].mxu0 %v163
    %v236 = vpop.f32.mrb[0].mxu0
    %v237 = vadd.f32 %v156, %v236
    %v238 = vpop.f32.mrb[0].mxu0
    %239 = vdwg.mxu0
    %v240 = vsub.f32 0.0, %v232
    %v241 = vsub.f32 0.0, %v237
    %v242 = vmul.f32 %v240, 1.442695
    %v243 = vpow.pop %v242
    %v244 = vmul.f32 %v241, 1.442695
    %v245 = vpow.pop %v244
    %v246 = vadd.f32 %v243, 1.0
    %v247 = vadd.f32 %v245, 1.0
    %v248 = vrcp.pop %v246
    %v249 = vmul.f32 1.0, %v248
    %v250 = vrcp.pop %v247
    %v251 = vmul.f32 1.0, %v250
    %v252 = vld [vmem:[#allocation2] sm:$0xff]
    %v253 = vld [vmem:[#allocation2 + $0x8] sm:$0xff]
    %v254 = vld [vmem:[#allocation2 + $0x10] sm:$0xff]
    %v255 = vld [vmem:[#allocation2 + $0x18] sm:$0xff]
    %v256 = vld [vmem:[#allocation2 + $0x20] sm:$0xff]
    %v257 = vld [vmem:[#allocation2 + $0x28] sm:$0xff]
    %v258 = vld [vmem:[#allocation2 + $0x30] sm:$0xff]
    %v259 = vld [vmem:[#allocation2 + $0x38] sm:$0xff]
    %v260 = vld [vmem:[#allocation2 + $0x40] sm:$0xff]
    %v261 = vld [vmem:[#allocation2 + $0x48] sm:$0xff]
    %v262 = vld [vmem:[#allocation2 + $0x50] sm:$0xff]
    %v263 = vld [vmem:[#allocation2 + $0x58] sm:$0xff]
    %v264 = vld [vmem:[#allocation2 + $0x60] sm:$0xff]
    %v265 = vld [vmem:[#allocation2 + $0x68] sm:$0xff]
    %v266 = vld [vmem:[#allocation2 + $0x70] sm:$0xff]
    %v267 = vld [vmem:[#allocation2 + $0x78] sm:$0xff]
    %v268 = vld [vmem:[#allocation2 + $0x80] sm:$0xff]
    %v269 = vld [vmem:[#allocation2 + $0x88] sm:$0xff]
    %v270 = vld [vmem:[#allocation2 + $0x90] sm:$0xff]
    %v271 = vld [vmem:[#allocation2 + $0x98] sm:$0xff]
    %v272 = vld [vmem:[#allocation2 + $0xa0] sm:$0xff]
    %v273 = vld [vmem:[#allocation2 + $0xa8] sm:$0xff]
    %v274 = vld [vmem:[#allocation2 + $0xb0] sm:$0xff]
    %v275 = vld [vmem:[#allocation2 + $0xb8] sm:$0xff]
    %v276 = vld [vmem:[#allocation2 + $0xc0] sm:$0xff]
    %v277 = vld [vmem:[#allocation2 + $0xc8] sm:$0xff]
    %v278 = vld [vmem:[#allocation2 + $0xd0] sm:$0xff]
    %v279 = vld [vmem:[#allocation2 + $0xd8] sm:$0xff]
    %v280 = vld [vmem:[#allocation2 + $0xe0] sm:$0xff]
    %v281 = vld [vmem:[#allocation2 + $0xe8] sm:$0xff]
    %v282 = vld [vmem:[#allocation2 + $0xf0] sm:$0xff]
    %v283 = vld [vmem:[#allocation2 + $0xf8] sm:$0xff]
    %v284 = vld [vmem:[#allocation2 + $0x100] sm:$0xff]
    %v285 = vld [vmem:[#allocation2 + $0x108] sm:$0xff]
    %v286 = vld [vmem:[#allocation2 + $0x110] sm:$0xff]
    %v287 = vld [vmem:[#allocation2 + $0x118] sm:$0xff]
    %v288 = vld [vmem:[#allocation2 + $0x120] sm:$0xff]
    %v289 = vld [vmem:[#allocation2 + $0x128] sm:$0xff]
    %v290 = vld [vmem:[#allocation2 + $0x130] sm:$0xff]
    %v291 = vld [vmem:[#allocation2 + $0x138] sm:$0xff]
    %v292 = vld [vmem:[#allocation2 + $0x140] sm:$0xff]
    %v293 = vld [vmem:[#allocation2 + $0x148] sm:$0xff]
    %v294 = vld [vmem:[#allocation2 + $0x150] sm:$0xff]
    %v295 = vld [vmem:[#allocation2 + $0x158] sm:$0xff]
    %v296 = vld [vmem:[#allocation2 + $0x160] sm:$0xff]
    %v297 = vld [vmem:[#allocation2 + $0x168] sm:$0xff]
    %v298 = vld [vmem:[#allocation2 + $0x170] sm:$0xff]
    %v299 = vld [vmem:[#allocation2 + $0x178] sm:$0xff]
    %v300 = vld [vmem:[#allocation2 + $0x180] sm:$0xff]
    %v301 = vld [vmem:[#allocation2 + $0x188] sm:$0xff]
    %v302 = vld [vmem:[#allocation2 + $0x190] sm:$0xff]
    %v303 = vld [vmem:[#allocation2 + $0x198] sm:$0xff]
    %v304 = vld [vmem:[#allocation2 + $0x1a0] sm:$0xff]
    %v305 = vld [vmem:[#allocation2 + $0x1a8] sm:$0xff]
    %v306 = vld [vmem:[#allocation2 + $0x1b0] sm:$0xff]
    %v307 = vld [vmem:[#allocation2 + $0x1b8] sm:$0xff]
    %v308 = vld [vmem:[#allocation2 + $0x1c0] sm:$0xff]
    %v309 = vld [vmem:[#allocation2 + $0x1c8] sm:$0xff]
    %v310 = vld [vmem:[#allocation2 + $0x1d0] sm:$0xff]
    %v311 = vld [vmem:[#allocation2 + $0x1d8] sm:$0xff]
    %v312 = vld [vmem:[#allocation2 + $0x1e0] sm:$0xff]
    %v313 = vld [vmem:[#allocation2 + $0x1e8] sm:$0xff]
    %v314 = vld [vmem:[#allocation2 + $0x1f0] sm:$0xff]
    %v315 = vld [vmem:[#allocation2 + $0x1f8] sm:$0xff]
    %vm316 = vcmask 261120
    %v318 = vsel %vm316, %v249, 0
    %v321 = vsel %vm316, %v251, 0
    %323 = vmatprep.subr.mxu0 %v253
    %324 = vmatpush1.msra.mxu0 %v252
    %325 = vmatprep.subr.mxu0 %v269
    %326 = vmatpush1.msra.mxu0 %v268
    %327 = vmatprep.subr.mxu0 %v285
    %328 = vmatpush1.msra.mxu0 %v284
    %329 = vmatprep.subr.mxu0 %v301
    %330 = vmatpush1.msra.mxu0 %v300
    %331 = vmatprep.subr.mxu0 0.0
    %332 = vmatpush1.msra.mxu0 0.0
    %333 = vmatprep.subr.mxu0 0.0
    %334 = vmatpush1.msra.mxu0 0.0
    %335 = vmatprep.subr.mxu0 0.0
    %336 = vmatpush1.msra.mxu0 0.0
    %337 = vmatprep.subr.mxu0 0.0
    %338 = vmatpush1.msra.mxu0 0.0
    %339 = vmatprep.subr.mxu0 0.0
    %340 = vmatpush1.msra.mxu0 0.0
    %341 = vmatprep.subr.mxu0 0.0
    %342 = vmatpush1.msra.mxu0 0.0
    %343 = vmatprep.subr.mxu0 0.0
    %344 = vmatpush1.msra.mxu0 0.0
    %345 = vmatprep.subr.mxu0 0.0
    %346 = vmatpush1.msra.mxu0 0.0
    %347 = vmatprep.subr.mxu0 0.0
    %348 = vmatpush1.msra.mxu0 0.0
    %349 = vmatprep.subr.mxu0 0.0
    %350 = vmatpush1.msra.mxu0 0.0
    %351 = vmatprep.subr.mxu0 0.0
    %352 = vmatpush1.msra.mxu0 0.0
    %353 = vmatprep.subr.mxu0 0.0
    %354 = vmatpush1.msra.mxu0 0.0
    %355 = vmatprep.subr.mxu0 0.0
    %356 = vmatpush1.msra.mxu0 0.0
    %357 = vmatprep.subr.mxu0 0.0
    %358 = vmatpush1.msra.mxu0 0.0
    %359 = vmatprep.subr.mxu0 0.0
    %360 = vmatpush1.msra.mxu0 0.0
    %361 = vmatprep.subr.mxu0 0.0
    %362 = vmatpush1.msra.mxu0 0.0
    %363 = vmatprep.subr.mxu0 0.0
    %364 = vmatpush1.msra.mxu0 0.0
    %365 = vmatprep.subr.mxu0 0.0
    %366 = vmatpush1.msra.mxu0 0.0
    %367 = vmatprep.subr.mxu0 0.0
    %368 = vmatpush1.msra.mxu0 0.0
    %369 = vmatprep.subr.mxu0 0.0
    %370 = vmatpush1.msra.mxu0 0.0
    %371 = vmatprep.subr.mxu0 0.0
    %372 = vmatpush1.msra.mxu0 0.0
    %373 = vmatprep.subr.mxu0 0.0
    %374 = vmatpush1.msra.mxu0 0.0
    %375 = vmatprep.subr.mxu0 0.0
    %376 = vmatpush1.msra.mxu0 0.0
    %377 = vmatprep.subr.mxu0 0.0
    %378 = vmatpush1.msra.mxu0 0.0
    %379 = vmatprep.subr.mxu0 0.0
    %380 = vmatpush1.msra.mxu0 0.0
    %381 = vmatprep.subr.mxu0 0.0
    %382 = vmatpush1.msra.mxu0 0.0
    %383 = vmatprep.subr.mxu0 0.0
    %384 = vmatpush1.msra.mxu0 0.0
    %385 = vmatprep.subr.mxu0 0.0
    %386 = vmatpush1.msra.mxu0 0.0
    %387 = vmatprep.mubr.f32.mxu0 0.0
    %388 = vmatmul.mubr.f32.gmra.mrb[0].mxu0 %v318
    %v389 = vpop.f32.mrb[0].mxu0
    %v390 = vadd.f32 0.0, %v389
    %v391 = vpop.f32.mrb[0].mxu0
    %v392 = vadd.f32 0.0, %v391
    %393 = vmatprep.mubr.f32.mxu0 0.0
    %394 = vmatmul.mubr.f32.gmra.mrb[0].mxu0 %v321
    %v395 = vpop.f32.mrb[0].mxu0
    %v396 = vadd.f32 0.0, %v395
    %v397 = vpop.f32.mrb[0].mxu0
    %v398 = vadd.f32 0.0, %v397
    %399 = vdwg.mxu0
    %400 = vmatprep.subr.mxu0 %v255
    %401 = vmatpush1.msra.mxu0 %v254
    %402 = vmatprep.subr.mxu0 %v271
    %403 = vmatpush1.msra.mxu0 %v270
    %404 = vmatprep.subr.mxu0 %v287
    %405 = vmatpush1.msra.mxu0 %v286
    %406 = vmatprep.subr.mxu0 %v303
    %407 = vmatpush1.msra.mxu0 %v302
    %408 = vmatprep.subr.mxu0 0.0
    %409 = vmatpush1.msra.mxu0 0.0
    %410 = vmatprep.subr.mxu0 0.0
    %411 = vmatpush1.msra.mxu0 0.0
    %412 = vmatprep.subr.mxu0 0.0
    %413 = vmatpush1.msra.mxu0 0.0
    %414 = vmatprep.subr.mxu0 0.0
    %415 = vmatpush1.msra.mxu0 0.0
    %416 = vmatprep.subr.mxu0 0.0
    %417 = vmatpush1.msra.mxu0 0.0
    %418 = vmatprep.subr.mxu0 0.0
    %419 = vmatpush1.msra.mxu0 0.0
    %420 = vmatprep.subr.mxu0 0.0
    %421 = vmatpush1.msra.mxu0 0.0
    %422 = vmatprep.subr.mxu0 0.0
    %423 = vmatpush1.msra.mxu0 0.0
    %424 = vmatprep.subr.mxu0 0.0
    %425 = vmatpush1.msra.mxu0 0.0
    %426 = vmatprep.subr.mxu0 0.0
    %427 = vmatpush1.msra.mxu0 0.0
    %428 = vmatprep.subr.mxu0 0.0
    %429 = vmatpush1.msra.mxu0 0.0
    %430 = vmatprep.subr.mxu0 0.0
    %431 = vmatpush1.msra.mxu0 0.0
    %432 = vmatprep.subr.mxu0 0.0
    %433 = vmatpush1.msra.mxu0 0.0
    %434 = vmatprep.subr.mxu0 0.0
    %435 = vmatpush1.msra.mxu0 0.0
    %436 = vmatprep.subr.mxu0 0.0
    %437 = vmatpush1.msra.mxu0 0.0
    %438 = vmatprep.subr.mxu0 0.0
    %439 = vmatpush1.msra.mxu0 0.0
    %440 = vmatprep.subr.mxu0 0.0
    %441 = vmatpush1.msra.mxu0 0.0
    %442 = vmatprep.subr.mxu0 0.0
    %443 = vmatpush1.msra.mxu0 0.0
    %444 = vmatprep.subr.mxu0 0.0
    %445 = vmatpush1.msra.mxu0 0.0
    %446 = vmatprep.subr.mxu0 0.0
    %447 = vmatpush1.msra.mxu0 0.0
    %448 = vmatprep.subr.mxu0 0.0
    %449 = vmatpush1.msra.mxu0 0.0
    %450 = vmatprep.subr.mxu0 0.0
    %451 = vmatpush1.msra.mxu0 0.0
    %452 = vmatprep.subr.mxu0 0.0
    %453 = vmatpush1.msra.mxu0 0.0
    %454 = vmatprep.subr.mxu0 0.0
    %455 = vmatpush1.msra.mxu0 0.0
    %456 = vmatprep.subr.mxu0 0.0
    %457 = vmatpush1.msra.mxu0 0.0
    %458 = vmatprep.subr.mxu0 0.0
    %459 = vmatpush1.msra.mxu0 0.0
    %460 = vmatprep.subr.mxu0 0.0
    %461 = vmatpush1.msra.mxu0 0.0
    %462 = vmatprep.subr.mxu0 0.0
    %463 = vmatpush1.msra.mxu0 0.0
    %464 = vmatprep.mubr.f32.mxu0 0.0
    %465 = vmatmul.mubr.f32.gmra.mrb[0].mxu0 %v318
    %v466 = vpop.f32.mrb[0].mxu0
    %v467 = vadd.f32 0.0, %v466
    %v468 = vpop.f32.mrb[0].mxu0
    %v469 = vadd.f32 0.0, %v468
    %470 = vmatprep.mubr.f32.mxu0 0.0
    %471 = vmatmul.mubr.f32.gmra.mrb[0].mxu0 %v321
    %v472 = vpop.f32.mrb[0].mxu0
    %v473 = vadd.f32 0.0, %v472
    %v474 = vpop.f32.mrb[0].mxu0
    %v475 = vadd.f32 0.0, %v474
    %476 = vdwg.mxu0
    %477 = vmatprep.subr.mxu0 %v257
    %478 = vmatpush1.msra.mxu0 %v256
    %479 = vmatprep.subr.mxu0 %v273
    %480 = vmatpush1.msra.mxu0 %v272
    %481 = vmatprep.subr.mxu0 %v289
    %482 = vmatpush1.msra.mxu0 %v288
    %483 = vmatprep.subr.mxu0 %v305
    %484 = vmatpush1.msra.mxu0 %v304
    %485 = vmatprep.subr.mxu0 0.0
    %486 = vmatpush1.msra.mxu0 0.0
    %487 = vmatprep.subr.mxu0 0.0
    %488 = vmatpush1.msra.mxu0 0.0
    %489 = vmatprep.subr.mxu0 0.0
    %490 = vmatpush1.msra.mxu0 0.0
    %491 = vmatprep.subr.mxu0 0.0
    %492 = vmatpush1.msra.mxu0 0.0
    %493 = vmatprep.subr.mxu0 0.0
    %494 = vmatpush1.msra.mxu0 0.0
    %495 = vmatprep.subr.mxu0 0.0
    %496 = vmatpush1.msra.mxu0 0.0
    %497 = vmatprep.subr.mxu0 0.0
    %498 = vmatpush1.msra.mxu0 0.0
    %499 = vmatprep.subr.mxu0 0.0
    %500 = vmatpush1.msra.mxu0 0.0
    %501 = vmatprep.subr.mxu0 0.0
    %502 = vmatpush1.msra.mxu0 0.0
    %503 = vmatprep.subr.mxu0 0.0
    %504 = vmatpush1.msra.mxu0 0.0
    %505 = vmatprep.subr.mxu0 0.0
    %506 = vmatpush1.msra.mxu0 0.0
    %507 = vmatprep.subr.mxu0 0.0
    %508 = vmatpush1.msra.mxu0 0.0
    %509 = vmatprep.subr.mxu0 0.0
    %510 = vmatpush1.msra.mxu0 0.0
    %511 = vmatprep.subr.mxu0 0.0
    %512 = vmatpush1.msra.mxu0 0.0
    %513 = vmatprep.subr.mxu0 0.0
    %514 = vmatpush1.msra.mxu0 0.0
    %515 = vmatprep.subr.mxu0 0.0
    %516 = vmatpush1.msra.mxu0 0.0
    %517 = vmatprep.subr.mxu0 0.0
    %518 = vmatpush1.msra.mxu0 0.0
    %519 = vmatprep.subr.mxu0 0.0
    %520 = vmatpush1.msra.mxu0 0.0
    %521 = vmatprep.subr.mxu0 0.0
    %522 = vmatpush1.msra.mxu0 0.0
    %523 = vmatprep.subr.mxu0 0.0
    %524 = vmatpush1.msra.mxu0 0.0
    %525 = vmatprep.subr.mxu0 0.0
    %526 = vmatpush1.msra.mxu0 0.0
    %527 = vmatprep.subr.mxu0 0.0
    %528 = vmatpush1.msra.mxu0 0.0
    %529 = vmatprep.subr.mxu0 0.0
    %530 = vmatpush1.msra.mxu0 0.0
    %531 = vmatprep.subr.mxu0 0.0
    %532 = vmatpush1.msra.mxu0 0.0
    %533 = vmatprep.subr.mxu0 0.0
    %534 = vmatpush1.msra.mxu0 0.0
    %535 = vmatprep.subr.mxu0 0.0
    %536 = vmatpush1.msra.mxu0 0.0
    %537 = vmatprep.subr.mxu0 0.0
    %538 = vmatpush1.msra.mxu0 0.0
    %539 = vmatprep.subr.mxu0 0.0
    %540 = vmatpush1.msra.mxu0 0.0
    %541 = vmatprep.mubr.f32.mxu0 0.0
    %542 = vmatmul.mubr.f32.gmra.mrb[0].mxu0 %v318
    %v543 = vpop.f32.mrb[0].mxu0
    %v544 = vadd.f32 0.0, %v543
    %v545 = vpop.f32.mrb[0].mxu0
    %v546 = vadd.f32 0.0, %v545
    %547 = vmatprep.mubr.f32.mxu0 0.0
    %548 = vmatmul.mubr.f32.gmra.mrb[0].mxu0 %v321
    %v549 = vpop.f32.mrb[0].mxu0
    %v550 = vadd.f32 0.0, %v549
    %v551 = vpop.f32.mrb[0].mxu0
    %v552 = vadd.f32 0.0, %v551
    %553 = vdwg.mxu0
    %554 = vmatprep.subr.mxu0 %v259
    %555 = vmatpush1.msra.mxu0 %v258
    %556 = vmatprep.subr.mxu0 %v275
    %557 = vmatpush1.msra.mxu0 %v274
    %558 = vmatprep.subr.mxu0 %v291
    %559 = vmatpush1.msra.mxu0 %v290
    %560 = vmatprep.subr.mxu0 %v307
    %561 = vmatpush1.msra.mxu0 %v306
    %562 = vmatprep.subr.mxu0 0.0
    %563 = vmatpush1.msra.mxu0 0.0
    %564 = vmatprep.subr.mxu0 0.0
    %565 = vmatpush1.msra.mxu0 0.0
    %566 = vmatprep.subr.mxu0 0.0
    %567 = vmatpush1.msra.mxu0 0.0
    %568 = vmatprep.subr.mxu0 0.0
    %569 = vmatpush1.msra.mxu0 0.0
    %570 = vmatprep.subr.mxu0 0.0
    %571 = vmatpush1.msra.mxu0 0.0
    %572 = vmatprep.subr.mxu0 0.0
    %573 = vmatpush1.msra.mxu0 0.0
    %574 = vmatprep.subr.mxu0 0.0
    %575 = vmatpush1.msra.mxu0 0.0
    %576 = vmatprep.subr.mxu0 0.0
    %577 = vmatpush1.msra.mxu0 0.0
    %578 = vmatprep.subr.mxu0 0.0
    %579 = vmatpush1.msra.mxu0 0.0
    %580 = vmatprep.subr.mxu0 0.0
    %581 = vmatpush1.msra.mxu0 0.0
    %582 = vmatprep.subr.mxu0 0.0
    %583 = vmatpush1.msra.mxu0 0.0
    %584 = vmatprep.subr.mxu0 0.0
    %585 = vmatpush1.msra.mxu0 0.0
    %586 = vmatprep.subr.mxu0 0.0
    %587 = vmatpush1.msra.mxu0 0.0
    %588 = vmatprep.subr.mxu0 0.0
    %589 = vmatpush1.msra.mxu0 0.0
    %590 = vmatprep.subr.mxu0 0.0
    %591 = vmatpush1.msra.mxu0 0.0
    %592 = vmatprep.subr.mxu0 0.0
    %593 = vmatpush1.msra.mxu0 0.0
    %594 = vmatprep.subr.mxu0 0.0
    %595 = vmatpush1.msra.mxu0 0.0
    %596 = vmatprep.subr.mxu0 0.0
    %597 = vmatpush1.msra.mxu0 0.0
    %598 = vmatprep.subr.mxu0 0.0
    %599 = vmatpush1.msra.mxu0 0.0
    %600 = vmatprep.subr.mxu0 0.0
    %601 = vmatpush1.msra.mxu0 0.0
    %602 = vmatprep.subr.mxu0 0.0
    %603 = vmatpush1.msra.mxu0 0.0
    %604 = vmatprep.subr.mxu0 0.0
    %605 = vmatpush1.msra.mxu0 0.0
    %606 = vmatprep.subr.mxu0 0.0
    %607 = vmatpush1.msra.mxu0 0.0
    %608 = vmatprep.subr.mxu0 0.0
    %609 = vmatpush1.msra.mxu0 0.0
    %610 = vmatprep.subr.mxu0 0.0
    %611 = vmatpush1.msra.mxu0 0.0
    %612 = vmatprep.subr.mxu0 0.0
    %613 = vmatpush1.msra.mxu0 0.0
    %614 = vmatprep.subr.mxu0 0.0
    %615 = vmatpush1.msra.mxu0 0.0
    %616 = vmatprep.subr.mxu0 0.0
    %617 = vmatpush1.msra.mxu0 0.0
    %618 = vmatprep.mubr.f32.mxu0 0.0
    %619 = vmatmul.mubr.f32.gmra.mrb[0].mxu0 %v318
    %v620 = vpop.f32.mrb[0].mxu0
    %v621 = vadd.f32 0.0, %v620
    %v622 = vpop.f32.mrb[0].mxu0
    %v623 = vadd.f32 0.0, %v622
    %624 = vmatprep.mubr.f32.mxu0 0.0
    %625 = vmatmul.mubr.f32.gmra.mrb[0].mxu0 %v321
    %v626 = vpop.f32.mrb[0].mxu0
    %v627 = vadd.f32 0.0, %v626
    %v628 = vpop.f32.mrb[0].mxu0
    %v629 = vadd.f32 0.0, %v628
    %630 = vdwg.mxu0
    %631 = vmatprep.subr.mxu0 %v261
    %632 = vmatpush1.msra.mxu0 %v260
    %633 = vmatprep.subr.mxu0 %v277
    %634 = vmatpush1.msra.mxu0 %v276
    %635 = vmatprep.subr.mxu0 %v293
    %636 = vmatpush1.msra.mxu0 %v292
    %637 = vmatprep.subr.mxu0 %v309
    %638 = vmatpush1.msra.mxu0 %v308
    %639 = vmatprep.subr.mxu0 0.0
    %640 = vmatpush1.msra.mxu0 0.0
    %641 = vmatprep.subr.mxu0 0.0
    %642 = vmatpush1.msra.mxu0 0.0
    %643 = vmatprep.subr.mxu0 0.0
    %644 = vmatpush1.msra.mxu0 0.0
    %645 = vmatprep.subr.mxu0 0.0
    %646 = vmatpush1.msra.mxu0 0.0
    %647 = vmatprep.subr.mxu0 0.0
    %648 = vmatpush1.msra.mxu0 0.0
    %649 = vmatprep.subr.mxu0 0.0
    %650 = vmatpush1.msra.mxu0 0.0
    %651 = vmatprep.subr.mxu0 0.0
    %652 = vmatpush1.msra.mxu0 0.0
    %653 = vmatprep.subr.mxu0 0.0
    %654 = vmatpush1.msra.mxu0 0.0
    %655 = vmatprep.subr.mxu0 0.0
    %656 = vmatpush1.msra.mxu0 0.0
    %657 = vmatprep.subr.mxu0 0.0
    %658 = vmatpush1.msra.mxu0 0.0
    %659 = vmatprep.subr.mxu0 0.0
    %660 = vmatpush1.msra.mxu0 0.0
    %661 = vmatprep.subr.mxu0 0.0
    %662 = vmatpush1.msra.mxu0 0.0
    %663 = vmatprep.subr.mxu0 0.0
    %664 = vmatpush1.msra.mxu0 0.0
    %665 = vmatprep.subr.mxu0 0.0
    %666 = vmatpush1.msra.mxu0 0.0
    %667 = vmatprep.subr.mxu0 0.0
    %668 = vmatpush1.msra.mxu0 0.0
    %669 = vmatprep.subr.mxu0 0.0
    %670 = vmatpush1.msra.mxu0 0.0
    %671 = vmatprep.subr.mxu0 0.0
    %672 = vmatpush1.msra.mxu0 0.0
    %673 = vmatprep.subr.mxu0 0.0
    %674 = vmatpush1.msra.mxu0 0.0
    %675 = vmatprep.subr.mxu0 0.0
    %676 = vmatpush1.msra.mxu0 0.0
    %677 = vmatprep.subr.mxu0 0.0
    %678 = vmatpush1.msra.mxu0 0.0
    %679 = vmatprep.subr.mxu0 0.0
    %680 = vmatpush1.msra.mxu0 0.0
    %681 = vmatprep.subr.mxu0 0.0
    %682 = vmatpush1.msra.mxu0 0.0
    %683 = vmatprep.subr.mxu0 0.0
    %684 = vmatpush1.msra.mxu0 0.0
    %685 = vmatprep.subr.mxu0 0.0
    %686 = vmatpush1.msra.mxu0 0.0
    %687 = vmatprep.subr.mxu0 0.0
    %688 = vmatpush1.msra.mxu0 0.0
    %689 = vmatprep.subr.mxu0 0.0
    %690 = vmatpush1.msra.mxu0 0.0
    %691 = vmatprep.subr.mxu0 0.0
    %692 = vmatpush1.msra.mxu0 0.0
    %693 = vmatprep.subr.mxu0 0.0
    %694 = vmatpush1.msra.mxu0 0.0
    %695 = vmatprep.mubr.f32.mxu0 0.0
    %696 = vmatmul.mubr.f32.gmra.mrb[0].mxu0 %v318
    %v697 = vpop.f32.mrb[0].mxu0
    %v698 = vadd.f32 0.0, %v697
    %v699 = vpop.f32.mrb[0].mxu0
    %v700 = vadd.f32 0.0, %v699
    %701 = vmatprep.mubr.f32.mxu0 0.0
    %702 = vmatmul.mubr.f32.gmra.mrb[0].mxu0 %v321
    %v703 = vpop.f32.mrb[0].mxu0
    %v704 = vadd.f32 0.0, %v703
    %v705 = vpop.f32.mrb[0].mxu0
    %v706 = vadd.f32 0.0, %v705
    %707 = vdwg.mxu0
    %708 = vmatprep.subr.mxu0 %v263
    %709 = vmatpush1.msra.mxu0 %v262
    %710 = vmatprep.subr.mxu0 %v279
    %711 = vmatpush1.msra.mxu0 %v278
    %712 = vmatprep.subr.mxu0 %v295
    %713 = vmatpush1.msra.mxu0 %v294
    %714 = vmatprep.subr.mxu0 %v311
    %715 = vmatpush1.msra.mxu0 %v310
    %716 = vmatprep.subr.mxu0 0.0
    %717 = vmatpush1.msra.mxu0 0.0
    %718 = vmatprep.subr.mxu0 0.0
    %719 = vmatpush1.msra.mxu0 0.0
    %720 = vmatprep.subr.mxu0 0.0
    %721 = vmatpush1.msra.mxu0 0.0
    %722 = vmatprep.subr.mxu0 0.0
    %723 = vmatpush1.msra.mxu0 0.0
    %724 = vmatprep.subr.mxu0 0.0
    %725 = vmatpush1.msra.mxu0 0.0
    %726 = vmatprep.subr.mxu0 0.0
    %727 = vmatpush1.msra.mxu0 0.0
    %728 = vmatprep.subr.mxu0 0.0
    %729 = vmatpush1.msra.mxu0 0.0
    %730 = vmatprep.subr.mxu0 0.0
    %731 = vmatpush1.msra.mxu0 0.0
    %732 = vmatprep.subr.mxu0 0.0
    %733 = vmatpush1.msra.mxu0 0.0
    %734 = vmatprep.subr.mxu0 0.0
    %735 = vmatpush1.msra.mxu0 0.0
    %736 = vmatprep.subr.mxu0 0.0
    %737 = vmatpush1.msra.mxu0 0.0
    %738 = vmatprep.subr.mxu0 0.0
    %739 = vmatpush1.msra.mxu0 0.0
    %740 = vmatprep.subr.mxu0 0.0
    %741 = vmatpush1.msra.mxu0 0.0
    %742 = vmatprep.subr.mxu0 0.0
    %743 = vmatpush1.msra.mxu0 0.0
    %744 = vmatprep.subr.mxu0 0.0
    %745 = vmatpush1.msra.mxu0 0.0
    %746 = vmatprep.subr.mxu0 0.0
    %747 = vmatpush1.msra.mxu0 0.0
    %748 = vmatprep.subr.mxu0 0.0
    %749 = vmatpush1.msra.mxu0 0.0
    %750 = vmatprep.subr.mxu0 0.0
    %751 = vmatpush1.msra.mxu0 0.0
    %752 = vmatprep.subr.mxu0 0.0
    %753 = vmatpush1.msra.mxu0 0.0
    %754 = vmatprep.subr.mxu0 0.0
    %755 = vmatpush1.msra.mxu0 0.0
    %756 = vmatprep.subr.mxu0 0.0
    %757 = vmatpush1.msra.mxu0 0.0
    %758 = vmatprep.subr.mxu0 0.0
    %759 = vmatpush1.msra.mxu0 0.0
    %760 = vmatprep.subr.mxu0 0.0
    %761 = vmatpush1.msra.mxu0 0.0
    %762 = vmatprep.subr.mxu0 0.0
    %763 = vmatpush1.msra.mxu0 0.0
    %764 = vmatprep.subr.mxu0 0.0
    %765 = vmatpush1.msra.mxu0 0.0
    %766 = vmatprep.subr.mxu0 0.0
    %767 = vmatpush1.msra.mxu0 0.0
    %768 = vmatprep.subr.mxu0 0.0
    %769 = vmatpush1.msra.mxu0 0.0
    %770 = vmatprep.subr.mxu0 0.0
    %771 = vmatpush1.msra.mxu0 0.0
    %772 = vmatprep.mubr.f32.mxu0 0.0
    %773 = vmatmul.mubr.f32.gmra.mrb[0].mxu0 %v318
    %v774 = vpop.f32.mrb[0].mxu0
    %v775 = vadd.f32 0.0, %v774
    %v776 = vpop.f32.mrb[0].mxu0
    %v777 = vadd.f32 0.0, %v776
    %778 = vmatprep.mubr.f32.mxu0 0.0
    %779 = vmatmul.mubr.f32.gmra.mrb[0].mxu0 %v321
    %v780 = vpop.f32.mrb[0].mxu0
    %v781 = vadd.f32 0.0, %v780
    %v782 = vpop.f32.mrb[0].mxu0
    %v783 = vadd.f32 0.0, %v782
    %784 = vdwg.mxu0
    %785 = vmatprep.subr.mxu0 %v265
    %786 = vmatpush1.msra.mxu0 %v264
    %787 = vmatprep.subr.mxu0 %v281
    %788 = vmatpush1.msra.mxu0 %v280
    %789 = vmatprep.subr.mxu0 %v297
    %790 = vmatpush1.msra.mxu0 %v296
    %791 = vmatprep.subr.mxu0 %v313
    %792 = vmatpush1.msra.mxu0 %v312
    %793 = vmatprep.subr.mxu0 0.0
    %794 = vmatpush1.msra.mxu0 0.0
    %795 = vmatprep.subr.mxu0 0.0
    %796 = vmatpush1.msra.mxu0 0.0
    %797 = vmatprep.subr.mxu0 0.0
    %798 = vmatpush1.msra.mxu0 0.0
    %799 = vmatprep.subr.mxu0 0.0
    %800 = vmatpush1.msra.mxu0 0.0
    %801 = vmatprep.subr.mxu0 0.0
    %802 = vmatpush1.msra.mxu0 0.0
    %803 = vmatprep.subr.mxu0 0.0
    %804 = vmatpush1.msra.mxu0 0.0
    %805 = vmatprep.subr.mxu0 0.0
    %806 = vmatpush1.msra.mxu0 0.0
    %807 = vmatprep.subr.mxu0 0.0
    %808 = vmatpush1.msra.mxu0 0.0
    %809 = vmatprep.subr.mxu0 0.0
    %810 = vmatpush1.msra.mxu0 0.0
    %811 = vmatprep.subr.mxu0 0.0
    %812 = vmatpush1.msra.mxu0 0.0
    %813 = vmatprep.subr.mxu0 0.0
    %814 = vmatpush1.msra.mxu0 0.0
    %815 = vmatprep.subr.mxu0 0.0
    %816 = vmatpush1.msra.mxu0 0.0
    %817 = vmatprep.subr.mxu0 0.0
    %818 = vmatpush1.msra.mxu0 0.0
    %819 = vmatprep.subr.mxu0 0.0
    %820 = vmatpush1.msra.mxu0 0.0
    %821 = vmatprep.subr.mxu0 0.0
    %822 = vmatpush1.msra.mxu0 0.0
    %823 = vmatprep.subr.mxu0 0.0
    %824 = vmatpush1.msra.mxu0 0.0
    %825 = vmatprep.subr.mxu0 0.0
    %826 = vmatpush1.msra.mxu0 0.0
    %827 = vmatprep.subr.mxu0 0.0
    %828 = vmatpush1.msra.mxu0 0.0
    %829 = vmatprep.subr.mxu0 0.0
    %830 = vmatpush1.msra.mxu0 0.0
    %831 = vmatprep.subr.mxu0 0.0
    %832 = vmatpush1.msra.mxu0 0.0
    %833 = vmatprep.subr.mxu0 0.0
    %834 = vmatpush1.msra.mxu0 0.0
    %835 = vmatprep.subr.mxu0 0.0
    %836 = vmatpush1.msra.mxu0 0.0
    %837 = vmatprep.subr.mxu0 0.0
    %838 = vmatpush1.msra.mxu0 0.0
    %839 = vmatprep.subr.mxu0 0.0
    %840 = vmatpush1.msra.mxu0 0.0
    %841 = vmatprep.subr.mxu0 0.0
    %842 = vmatpush1.msra.mxu0 0.0
    %843 = vmatprep.subr.mxu0 0.0
    %844 = vmatpush1.msra.mxu0 0.0
    %845 = vmatprep.subr.mxu0 0.0
    %846 = vmatpush1.msra.mxu0 0.0
    %847 = vmatprep.subr.mxu0 0.0
    %848 = vmatpush1.msra.mxu0 0.0
    %849 = vmatprep.mubr.f32.mxu0 0.0
    %850 = vmatmul.mubr.f32.gmra.mrb[0].mxu0 %v318
    %v851 = vpop.f32.mrb[0].mxu0
    %v852 = vadd.f32 0.0, %v851
    %v853 = vpop.f32.mrb[0].mxu0
    %v854 = vadd.f32 0.0, %v853
    %855 = vmatprep.mubr.f32.mxu0 0.0
    %856 = vmatmul.mubr.f32.gmra.mrb[0].mxu0 %v321
    %v857 = vpop.f32.mrb[0].mxu0
    %v858 = vadd.f32 0.0, %v857
    %v859 = vpop.f32.mrb[0].mxu0
    %v860 = vadd.f32 0.0, %v859
    %861 = vdwg.mxu0
    %862 = vmatprep.subr.mxu0 %v267
    %863 = vmatpush1.msra.mxu0 %v266
    %864 = vmatprep.subr.mxu0 %v283
    %865 = vmatpush1.msra.mxu0 %v282
    %866 = vmatprep.subr.mxu0 %v299
    %867 = vmatpush1.msra.mxu0 %v298
    %868 = vmatprep.subr.mxu0 %v315
    %869 = vmatpush1.msra.mxu0 %v314
    %870 = vmatprep.subr.mxu0 0.0
    %871 = vmatpush1.msra.mxu0 0.0
    %872 = vmatprep.subr.mxu0 0.0
    %873 = vmatpush1.msra.mxu0 0.0
    %874 = vmatprep.subr.mxu0 0.0
    %875 = vmatpush1.msra.mxu0 0.0
    %876 = vmatprep.subr.mxu0 0.0
    %877 = vmatpush1.msra.mxu0 0.0
    %878 = vmatprep.subr.mxu0 0.0
    %879 = vmatpush1.msra.mxu0 0.0
    %880 = vmatprep.subr.mxu0 0.0
    %881 = vmatpush1.msra.mxu0 0.0
    %882 = vmatprep.subr.mxu0 0.0
    %883 = vmatpush1.msra.mxu0 0.0
    %884 = vmatprep.subr.mxu0 0.0
    %885 = vmatpush1.msra.mxu0 0.0
    %886 = vmatprep.subr.mxu0 0.0
    %887 = vmatpush1.msra.mxu0 0.0
    %888 = vmatprep.subr.mxu0 0.0
    %889 = vmatpush1.msra.mxu0 0.0
    %890 = vmatprep.subr.mxu0 0.0
    %891 = vmatpush1.msra.mxu0 0.0
    %892 = vmatprep.subr.mxu0 0.0
    %893 = vmatpush1.msra.mxu0 0.0
    %894 = vmatprep.subr.mxu0 0.0
    %895 = vmatpush1.msra.mxu0 0.0
    %896 = vmatprep.subr.mxu0 0.0
    %897 = vmatpush1.msra.mxu0 0.0
    %898 = vmatprep.subr.mxu0 0.0
    %899 = vmatpush1.msra.mxu0 0.0
    %900 = vmatprep.subr.mxu0 0.0
    %901 = vmatpush1.msra.mxu0 0.0
    %902 = vmatprep.subr.mxu0 0.0
    %903 = vmatpush1.msra.mxu0 0.0
    %904 = vmatprep.subr.mxu0 0.0
    %905 = vmatpush1.msra.mxu0 0.0
    %906 = vmatprep.subr.mxu0 0.0
    %907 = vmatpush1.msra.mxu0 0.0
    %908 = vmatprep.subr.mxu0 0.0
    %909 = vmatpush1.msra.mxu0 0.0
    %910 = vmatprep.subr.mxu0 0.0
    %911 = vmatpush1.msra.mxu0 0.0
    %912 = vmatprep.subr.mxu0 0.0
    %913 = vmatpush1.msra.mxu0 0.0
    %914 = vmatprep.subr.mxu0 0.0
    %915 = vmatpush1.msra.mxu0 0.0
    %916 = vmatprep.subr.mxu0 0.0
    %917 = vmatpush1.msra.mxu0 0.0
    %918 = vmatprep.subr.mxu0 0.0
    %919 = vmatpush1.msra.mxu0 0.0
    %920 = vmatprep.subr.mxu0 0.0
    %921 = vmatpush1.msra.mxu0 0.0
    %922 = vmatprep.subr.mxu0 0.0
    %923 = vmatpush1.msra.mxu0 0.0
    %924 = vmatprep.subr.mxu0 0.0
    %925 = vmatpush1.msra.mxu0 0.0
    %926 = vmatprep.mubr.f32.mxu0 0.0
    %927 = vmatmul.mubr.f32.gmra.mrb[0].mxu0 %v318
    %v928 = vpop.f32.mrb[0].mxu0
    %v929 = vadd.f32 0.0, %v928
    %v930 = vpop.f32.mrb[0].mxu0
    %v931 = vadd.f32 0.0, %v930
    %932 = vmatprep.mubr.f32.mxu0 0.0
    %933 = vmatmul.mubr.f32.gmra.mrb[0].mxu0 %v321
    %v934 = vpop.f32.mrb[0].mxu0
    %v935 = vadd.f32 0.0, %v934
    %v936 = vpop.f32.mrb[0].mxu0
    %v937 = vadd.f32 0.0, %v936
    %938 = vdwg.mxu0
    %939 = vst.msk [vmem:[#allocation5] sm:$0xff] %vm316, %v232
    %940 = vst.msk [vmem:[#allocation5 + $0x8] sm:$0xff] %vm316, %v237
    %941 = vst [vmem:[#allocation6] sm:$0xff] %v390
    %942 = vst [vmem:[#allocation6 + $0x8] sm:$0xff] %v392
    %943 = vst [vmem:[#allocation6 + $0x10] sm:$0xff] %v467
    %944 = vst [vmem:[#allocation6 + $0x18] sm:$0xff] %v469
    %945 = vst [vmem:[#allocation6 + $0x20] sm:$0xff] %v544
    %946 = vst [vmem:[#allocation6 + $0x28] sm:$0xff] %v546
    %947 = vst [vmem:[#allocation6 + $0x30] sm:$0xff] %v621
    %948 = vst [vmem:[#allocation6 + $0x38] sm:$0xff] %v623
    %949 = vst [vmem:[#allocation6 + $0x40] sm:$0xff] %v698
    %950 = vst [vmem:[#allocation6 + $0x48] sm:$0xff] %v700
    %951 = vst [vmem:[#allocation6 + $0x50] sm:$0xff] %v775
    %952 = vst [vmem:[#allocation6 + $0x58] sm:$0xff] %v777
    %953 = vst [vmem:[#allocation6 + $0x60] sm:$0xff] %v852
    %954 = vst [vmem:[#allocation6 + $0x68] sm:$0xff] %v854
    %955 = vst [vmem:[#allocation6 + $0x70] sm:$0xff] %v929
    %956 = vst [vmem:[#allocation6 + $0x78] sm:$0xff] %v931
    %957 = vst [vmem:[#allocation6 + $0x80] sm:$0xff] %v396
    %958 = vst [vmem:[#allocation6 + $0x88] sm:$0xff] %v398
    %959 = vst [vmem:[#allocation6 + $0x90] sm:$0xff] %v473
    %960 = vst [vmem:[#allocation6 + $0x98] sm:$0xff] %v475
    %961 = vst [vmem:[#allocation6 + $0xa0] sm:$0xff] %v550
    %962 = vst [vmem:[#allocation6 + $0xa8] sm:$0xff] %v552
    %963 = vst [vmem:[#allocation6 + $0xb0] sm:$0xff] %v627
    %964 = vst [vmem:[#allocation6 + $0xb8] sm:$0xff] %v629
    %965 = vst [vmem:[#allocation6 + $0xc0] sm:$0xff] %v704
    %966 = vst [vmem:[#allocation6 + $0xc8] sm:$0xff] %v706
    %967 = vst [vmem:[#allocation6 + $0xd0] sm:$0xff] %v781
    %968 = vst [vmem:[#allocation6 + $0xd8] sm:$0xff] %v783
    %969 = vst [vmem:[#allocation6 + $0xe0] sm:$0xff] %v858
    %970 = vst [vmem:[#allocation6 + $0xe8] sm:$0xff] %v860
    %971 = vst [vmem:[#allocation6 + $0xf0] sm:$0xff] %v935
    %972 = vst [vmem:[#allocation6 + $0xf8] sm:$0xff] %v937
    // Predicated region
    $region30: #{tpu_custom_call.1} parent=1 // pred_check
      _
    $region31: #{tpu_custom_call.1} parent=1 // pred_check_branch
      %974 = sbr.rel (0) target = $region33
    $region32: #{tpu_custom_call.1} parent=1 // pred_region
      %s976 = ssub.s32 256, 256
      %977 = vsyncadd [#allocation4], %s976
      %s978 = sshll.u32 [#allocation5], 4
      %s979 = int_to_ptr.vmem [resolvable:$true] %s978
      %984 = dma.vmem_to_hbm [thread:$0]  %s979, 256, %s6, [#allocation4], 128, 128, 8
    $region33: #{tpu_custom_call.1} parent=1 // pred_fallthru
      _
    // Predicated region
    $region34: #{tpu_custom_call.1} parent=1 // pred_check
      _
    $region35: #{tpu_custom_call.1} parent=1 // pred_check_branch
      %986 = sbr.rel (0) target = $region37
    $region36: #{tpu_custom_call.1} parent=1 // pred_region
      %s988 = ssub.s32 4096, 4096
      %989 = vsyncadd [#allocation7], %s988
      %s990 = sshll.u32 [#allocation6], 4
      %s991 = int_to_ptr.vmem [resolvable:$true] %s990
      %996 = dma.vmem_to_hbm [thread:$0]  %s991, 4096, %s7, [#allocation7], 2048, 2048, 128
    $region37: #{tpu_custom_call.1} parent=1 // pred_fallthru
      _
    // Predicated region
    $region38: #{tpu_custom_call.1} parent=1 // pred_check
      _
    $region39: #{tpu_custom_call.1} parent=1 // pred_check_branch
      %998 = sbr.rel (0) target = $region41
    $region40: #{tpu_custom_call.1} parent=1 // pred_region
      %999 = dma.done [#allocation4], 256
    $region41: #{tpu_custom_call.1} parent=1 // pred_fallthru
      _
    // Predicated region
    $region42: #{tpu_custom_call.1} parent=1 // pred_check
      _
    $region43: #{tpu_custom_call.1} parent=1 // pred_check_branch
      %1001 = sbr.rel (0) target = $region45
    $region44: #{tpu_custom_call.1} parent=1 // pred_region
      %1002 = dma.done [#allocation7], 4096
    $region45: #{tpu_custom_call.1} parent=1 // pred_fallthru
      _
    %1003 = vsyncpa [#allocation3], 1
    %1004 = vsyncpa [#allocation4], 1
    %1005 = vsyncpa [#allocation7], 1

</llo_original>
